<compile_context>
chip_gen: v7x
topology: tpu7x:2x2x1
jax: 0.10.0
libtpu: 0.0.40
codegen_flags: <defaults>
</compile_context>

<pallas_src>
import functools
import math

import jax
import jax.numpy as jnp
from jax import lax
from jax.experimental import pallas as pl
from jax.experimental.pallas import tpu as pltpu


def _round_up(n, m):
    return ((n + m - 1) // m) * m


def _same_pad_left(kernel_size, dilation, causal):
    k_eff = (kernel_size - 1) * dilation + 1
    padding_total = k_eff - 1                      # stride == 1 -> same length
    return padding_total if causal else padding_total - padding_total // 2


# --------------------------------------------------------------------------
# Fused ResnetBlock1d kernel:
#   GN -> SiLU -> conv1  ->  GN -> SiLU -> conv2 (+ folded 1x1 / identity res)
# One batch element per grid step; the intermediate h never leaves VMEM.
# --------------------------------------------------------------------------
def _resnet_block_kernel(x_ref, g1_ref, b1_ref, w1_ref, c1_ref,
                         g2_ref, b2_ref, w2_ref, c2_ref, o_ref, *,
                         num_groups, eps, l_real,
                         k1, dil1, pad_left1, k2, dil2, pad_left2,
                         residual_identity, matmul_dtype):
    x = x_ref[...].astype(jnp.float32)                 # (C_in, Lp), zero tail
    lp = x.shape[1]
    col = lax.broadcasted_iota(jnp.int32, (1, lp), 1)
    in_range = col < l_real
    pad_cols = lp - l_real                             # static Python int

    def gn_silu(v, gamma, beta):
        # GroupNorm (two-pass, zero lane-padding corrected analytically),
        # fused affine + SiLU, early cast to MXU dtype, single tail mask.
        c = v.shape[0]
        g = num_groups
        cpg = c // g
        n = jnp.float32(cpg * l_real)
        s_c = jnp.sum(v, axis=1, keepdims=True)        # (C, 1) lane reduce
        if g == 1:
            mean_g = jnp.sum(s_c, axis=0, keepdims=True) / n        # (1, 1)
            mean_c = mean_g
        else:
            mean_g = jnp.sum(s_c.reshape(g, cpg), axis=1, keepdims=True) / n
            mean_c = jnp.broadcast_to(mean_g, (g, cpg)).reshape(c, 1)
        vc = v - mean_c                                # padded cols become -mean
        q_c = jnp.sum(vc * vc, axis=1, keepdims=True)
        if g == 1:
            q_g = jnp.sum(q_c, axis=0, keepdims=True)
        else:
            q_g = jnp.sum(q_c.reshape(g, cpg), axis=1, keepdims=True)
        # subtract the (0 - mean)^2 contribution of the zero lane-padding
        var_g = (q_g - jnp.float32(cpg * pad_cols) * mean_g * mean_g) / n
        inv_g = lax.rsqrt(var_g + jnp.float32(eps))
        inv_c = inv_g if g == 1 else jnp.broadcast_to(inv_g, (g, cpg)).reshape(c, 1)
        a_c = inv_c * gamma                            # fold inv into gamma
        xn = vc * a_c + beta                           # one fma on the slab
        act = xn * jax.nn.sigmoid(xn)                  # SiLU (sigmoid -> EUP)
        act = act.astype(matmul_dtype)                 # early narrow cast
        # one tail mask; the conv taps below pull these zeros via roll
        return jnp.where(in_range, act, jnp.zeros((), matmul_dtype))

    def conv_taps(act, k, dil, pad_left, extra=None):
        # K taps stacked into one MXU contraction of depth k*C (+ residual rows).
        pieces = []
        for j in range(k):                             # static, unrolled
            off = j * dil - pad_left                   # input col = output col + off
            pieces.append(act if off == 0
                          else pltpu.roll(act, shift=(-off) % lp, axis=1))
        if extra is not None:
            pieces.append(extra)
        return pieces[0] if len(pieces) == 1 else jnp.concatenate(pieces, axis=0)

    # ---- block 1: GN -> SiLU -> conv1 ----
    act1 = gn_silu(x, g1_ref[...], b1_ref[...])
    h = jnp.dot(w1_ref[...], conv_taps(act1, k1, dil1, pad_left1),
                preferred_element_type=jnp.float32) + c1_ref[...]
    h = jnp.where(in_range, h, 0.0)                    # zero tail -> valid GN input

    # ---- block 2: GN -> SiLU -> conv2, residual folded into the contraction ----
    act2 = gn_silu(h, g2_ref[...], b2_ref[...])
    res_rows = None if residual_identity else x.astype(matmul_dtype)
    acc = jnp.dot(w2_ref[...],
                  conv_taps(act2, k2, dil2, pad_left2, extra=res_rows),
                  preferred_element_type=jnp.float32) + c2_ref[...]
    if residual_identity:
        acc = acc + x                                  # identity residual, f32
    acc = jnp.where(in_range, acc, 0.0)                # keep padded tail zero
    o_ref[...] = acc.astype(o_ref.dtype)


# --------------------------------------------------------------------------
# Wrapper
# --------------------------------------------------------------------------
def _vmem_capacity_bytes():
    try:
        return int(pltpu.get_tpu_info().vmem_capacity_bytes)
    except Exception:
        return 64 << 20                                # conservative (v7x per-TC)


def _vmem_limit_bytes(c_in, c_mid, c_out, k1, k2, lp, io_itemsize, matmul_dtype):
    f32 = 4
    mm = jnp.dtype(matmul_dtype).itemsize
    io = 2 * (c_in + c_out) * lp * io_itemsize         # double-buffered in/out
    interm = (c_in * (f32 + mm) + k1 * c_in * mm       # x, act1, stacked1
              + c_mid * (f32 + mm)                     # h, act2
              + (k2 * c_mid + c_in) * mm               # stacked2 (+ res rows)
              + c_out * f32) * lp                      # acc
    est = io + interm + (2 << 20)
    cap = _vmem_capacity_bytes()                       # 128 MiB v5e/v6e, 64 MiB v7x
    return int(min(max(2 * est, 32 << 20), cap - (8 << 20)))


@functools.partial(jax.jit, static_argnames=("patch_size", "num_groups", "eps",
                                             "causal", "dilation", "matmul_dtype"))
def patcher_forward(x, params, *, patch_size, num_groups=1, eps=1e-5,
                    causal=False, dilation=1, matmul_dtype=jnp.float32):
    """Patcher: fused ResnetBlock1d (one Pallas kernel) + 'b c (l p) -> b (c p) l'."""
    B, C_in, L = x.shape
    assert L % patch_size == 0

    w1, w2 = params["b1_w"], params["b2_w"]
    C_mid, _, K1 = w1.shape
    C_out, _, K2 = w2.shape                            # ResnetBlock1d: C_out == C_mid
    assert C_in % num_groups == 0 and C_mid % num_groups == 0

    dil1, dil2 = dilation, 1                           # block2 uses ConvBlock1d defaults
    keff1 = (K1 - 1) * dil1 + 1
    keff2 = (K2 - 1) * dil2 + 1
    pad_left1 = _same_pad_left(K1, dil1, causal)
    pad_left2 = _same_pad_left(K2, dil2, causal)
    pad_need = max(keff1, keff2) - 1                   # taps pull zeros from the tail

    Lp = _round_up(max(L + pad_need, 128), 128)
    xp = jnp.pad(x, ((0, 0), (0, 0), (0, Lp - L)))     # lane-dense, zero tail

    # weights fused over taps: w[o, j*C + i] = conv_w[o, i, j]
    w1f = jnp.transpose(w1, (0, 2, 1)).reshape(C_mid, K1 * C_in).astype(matmul_dtype)
    w2f = jnp.transpose(w2, (0, 2, 1)).reshape(C_out, K2 * C_mid).astype(jnp.float32)
    g1 = params["b1_gamma"].reshape(C_in, 1).astype(jnp.float32)
    b1 = params["b1_beta"].reshape(C_in, 1).astype(jnp.float32)
    c1 = params["b1_b"].reshape(C_mid, 1).astype(jnp.float32)
    g2 = params["b2_gamma"].reshape(C_mid, 1).astype(jnp.float32)
    b2 = params["b2_beta"].reshape(C_mid, 1).astype(jnp.float32)
    c2 = params["b2_b"].astype(jnp.float32)

    out_w = params.get("out_w")
    residual_identity = out_w is None
    if residual_identity:
        assert C_in == C_out
        w2b = w2f.astype(matmul_dtype)
        k2_depth = K2 * C_mid
    else:
        # fold the 1x1-conv residual into the second MXU contraction
        wres = out_w[:, :, 0].astype(jnp.float32)
        w2b = jnp.concatenate([w2f, wres], axis=1).astype(matmul_dtype)
        out_b = params.get("out_b")
        if out_b is not None:
            c2 = c2 + out_b.astype(jnp.float32)
        k2_depth = K2 * C_mid + C_in
    c2b = c2.reshape(C_out, 1)

    kernel = functools.partial(
        _resnet_block_kernel, num_groups=num_groups, eps=eps, l_real=L,
        k1=K1, dil1=dil1, pad_left1=pad_left1,
        k2=K2, dil2=dil2, pad_left2=pad_left2,
        residual_identity=residual_identity, matmul_dtype=matmul_dtype)

    h = pl.pallas_call(
        kernel,
        out_shape=jax.ShapeDtypeStruct((B, C_out, Lp), x.dtype),
        grid_spec=pltpu.PrefetchScalarGridSpec(
            num_scalar_prefetch=0,
            grid=(B,),
            in_specs=[
                pl.BlockSpec((pl.Squeezed(), C_in, Lp), lambda b: (b, 0, 0)),
                pl.BlockSpec((C_in, 1), lambda b: (0, 0)),
                pl.BlockSpec((C_in, 1), lambda b: (0, 0)),
                pl.BlockSpec((C_mid, K1 * C_in), lambda b: (0, 0)),
                pl.BlockSpec((C_mid, 1), lambda b: (0, 0)),
                pl.BlockSpec((C_mid, 1), lambda b: (0, 0)),
                pl.BlockSpec((C_mid, 1), lambda b: (0, 0)),
                pl.BlockSpec((C_out, k2_depth), lambda b: (0, 0)),
                pl.BlockSpec((C_out, 1), lambda b: (0, 0)),
            ],
            out_specs=pl.BlockSpec((pl.Squeezed(), C_out, Lp), lambda b: (b, 0, 0)),
        ),
        compiler_params=pltpu.CompilerParams(
            dimension_semantics=("parallel",),
            vmem_limit_bytes=_vmem_limit_bytes(
                C_in, C_mid, C_out, K1, K2, Lp,
                jnp.dtype(x.dtype).itemsize, matmul_dtype)),
    )(xp, g1, b1, w1f, c1, g2, b2, w2b, c2b)

    h = h[..., :L]                                     # drop lane padding
    # rearrange 'b c (l p) -> b (c p) l' (layout-only, wrapper side)
    h = h.reshape(B, C_out, L // patch_size, patch_size)
    return jnp.transpose(h, (0, 1, 3, 2)).reshape(B, C_out * patch_size,
                                                  L // patch_size)


# --------------------------------------------------------------------------
# Pure-JAX reference (mirrors the PyTorch module)
# --------------------------------------------------------------------------
def _ref_patcher(x, params, *, patch_size, num_groups=1, eps=1e-5, causal=False):
    def groupnorm(v, gamma, beta):
        Bv, Cv, Lv = v.shape
        vg = v.reshape(Bv, num_groups, -1)
        mean = vg.mean(-1, keepdims=True)
        var = vg.var(-1, keepdims=True)                # biased, like torch GroupNorm
        vn = ((vg - mean) / jnp.sqrt(var + eps)).reshape(Bv, Cv, Lv)
        return vn * gamma[None, :, None] + beta[None, :, None]

    def conv_same(v, w, b):
        K = w.shape[-1]
        pt = K - 1                                     # stride=1, dilation=1
        lpad = pt if causal else pt - pt // 2
        rpad = 0 if causal else pt // 2
        vp = jnp.pad(v, ((0, 0), (0, 0), (lpad, rpad)))
        out = lax.conv_general_dilated(vp, w, (1,), "VALID",
                                       dimension_numbers=("NCH", "OIH", "NCH"))
        return out + b[None, :, None]

    def conv_block(v, gamma, beta, w, b):
        vn = groupnorm(v, gamma, beta)
        act = vn * jax.nn.sigmoid(vn)
        return conv_same(act, w, b)

    h = conv_block(x, params["b1_gamma"], params["b1_beta"], params["b1_w"], params["b1_b"])
    h = conv_block(h, params["b2_gamma"], params["b2_beta"], params["b2_w"], params["b2_b"])
    if params.get("out_w") is not None:
        res = conv_same(x, params["out_w"], params["out_b"])
    else:
        res = x
    y = h + res
    Bv, Cv, Lv = y.shape
    y = y.reshape(Bv, Cv, Lv // patch_size, patch_size)
    return jnp.transpose(y, (0, 1, 3, 2)).reshape(Bv, Cv * patch_size, Lv // patch_size)


if __name__ == "__main__":
    B, in_ch, out_ch, patch, L = 2, 8, 64, 4, 64
    mid = out_ch // patch                              # 16
    K, num_groups, eps = 3, 1, 1e-5                    # Patcher uses num_groups=1

    key = jax.random.PRNGKey(0)
    ks = jax.random.split(key, 11)
    normal = jax.random.normal
    x = normal(ks[0], (B, in_ch, L), jnp.float32)
    params = {
        "b1_gamma": 1.0 + 0.1 * normal(ks[1], (in_ch,), jnp.float32),
        "b1_beta": 0.1 * normal(ks[2], (in_ch,), jnp.float32),
        "b1_w": normal(ks[3], (mid, in_ch, K), jnp.float32) / math.sqrt(in_ch * K),
        "b1_b": 0.05 * normal(ks[4], (mid,), jnp.float32),
        "b2_gamma": 1.0 + 0.1 * normal(ks[5], (mid,), jnp.float32),
        "b2_beta": 0.1 * normal(ks[6], (mid,), jnp.float32),
        "b2_w": normal(ks[7], (mid, mid, K), jnp.float32) / math.sqrt(mid * K),
        "b2_b": 0.05 * normal(ks[8], (mid,), jnp.float32),
        # to_out 1x1 conv (in_channels != out_channels // patch_size)
        "out_w": normal(ks[9], (mid, in_ch, 1), jnp.float32) / math.sqrt(in_ch),
        "out_b": 0.05 * normal(ks[10], (mid,), jnp.float32),
    }

    ref = _ref_patcher(x, params, patch_size=patch, num_groups=num_groups, eps=eps)

    # f32 MXU-operand path (exact check)
    out = patcher_forward(x, params, patch_size=patch, num_groups=num_groups,
                          eps=eps, matmul_dtype=jnp.float32)
    out = jax.block_until_ready(out)
    assert out.shape == (B, out_ch, L // patch), out.shape
    err = float(jnp.max(jnp.abs(out - ref)))
    assert jnp.allclose(out, ref, atol=3e-4, rtol=3e-4), err

    # bf16 MXU-operand path (recommended on v5e/v6e/v7x; stats/accumulation f32)
    out_bf16 = patcher_forward(x, params, patch_size=patch, num_groups=num_groups,
                               eps=eps, matmul_dtype=jnp.bfloat16)
    out_bf16 = jax.block_until_ready(out_bf16)
    err_bf16 = float(jnp.max(jnp.abs(out_bf16 - ref)))
    assert jnp.allclose(out_bf16, ref, atol=1e-1, rtol=1e-1), err_bf16

    print("KERNEL_OK")
</pallas_src>

<mosaic_0001>
module attributes {stable_mosaic.version = 11 : i64} {
  func.func @_resnet_block_kernel(%arg0: i32, %arg1: memref<1x8x128xf32, #tpu.memory_space<vmem>>, %arg2: memref<8x1xf32, #tpu.memory_space<vmem>>, %arg3: memref<8x1xf32, #tpu.memory_space<vmem>>, %arg4: memref<16x24xf32, #tpu.memory_space<vmem>>, %arg5: memref<16x1xf32, #tpu.memory_space<vmem>>, %arg6: memref<16x1xf32, #tpu.memory_space<vmem>>, %arg7: memref<16x1xf32, #tpu.memory_space<vmem>>, %arg8: memref<16x56xf32, #tpu.memory_space<vmem>>, %arg9: memref<16x1xf32, #tpu.memory_space<vmem>>, %arg10: memref<1x16x128xf32, #tpu.memory_space<vmem>>) attributes {dimension_semantics = [#tpu.dimension_semantics<parallel>], iteration_bounds = array<i64: 2>, scalar_prefetch = 0 : i64, scratch_operands = 0 : i64, tpu.core_type = #tpu.core_type<tc>, window_params = [{transform_indices = @transform_0, window_bounds = array<i64: 1, 8, 128>}, {pipeline_mode = #tpu.pipeline_mode<synchronous>, transform_indices = @transform_1, window_bounds = array<i64: 8, 1>}, {pipeline_mode = #tpu.pipeline_mode<synchronous>, transform_indices = @transform_2, window_bounds = array<i64: 8, 1>}, {pipeline_mode = #tpu.pipeline_mode<synchronous>, transform_indices = @transform_3, window_bounds = array<i64: 16, 24>}, {pipeline_mode = #tpu.pipeline_mode<synchronous>, transform_indices = @transform_4, window_bounds = array<i64: 16, 1>}, {pipeline_mode = #tpu.pipeline_mode<synchronous>, transform_indices = @transform_5, window_bounds = array<i64: 16, 1>}, {pipeline_mode = #tpu.pipeline_mode<synchronous>, transform_indices = @transform_6, window_bounds = array<i64: 16, 1>}, {pipeline_mode = #tpu.pipeline_mode<synchronous>, transform_indices = @transform_7, window_bounds = array<i64: 16, 56>}, {pipeline_mode = #tpu.pipeline_mode<synchronous>, transform_indices = @transform_8, window_bounds = array<i64: 16, 1>}, {transform_indices = @transform_9, window_bounds = array<i64: 1, 16, 128>}]} {
    %c0 = arith.constant 0 : index
    %c0_0 = arith.constant 0 : index
    %c0_1 = arith.constant 0 : index
    %0 = vector.load %arg1[%c0, %c0_0, %c0_1] : memref<1x8x128xf32, #tpu.memory_space<vmem>>, vector<1x8x128xf32>
    %1 = vector.shape_cast %0 : vector<1x8x128xf32> to vector<8x128xf32>
    %2 = tpu.iota {dimensions = array<i32: 1>} : vector<1x128xi32>
    %c64_i32 = arith.constant 64 : i32
    %3 = vector.broadcast %c64_i32 : i32 to vector<1x128xi32>
    %4 = arith.cmpi slt, %2, %3 : vector<1x128xi32>
    %c0_2 = arith.constant 0 : index
    %c0_3 = arith.constant 0 : index
    %5 = vector.load %arg2[%c0_2, %c0_3] : memref<8x1xf32, #tpu.memory_space<vmem>>, vector<8x1xf32>
    %c0_4 = arith.constant 0 : index
    %c0_5 = arith.constant 0 : index
    %6 = vector.load %arg3[%c0_4, %c0_5] : memref<8x1xf32, #tpu.memory_space<vmem>>, vector<8x1xf32>
    %cst = arith.constant dense<0.000000e+00> : vector<8xf32>
    %7 = vector.multi_reduction <add>, %1, %cst [1] : vector<8x128xf32> to vector<8xf32>
    %8 = vector.shape_cast %7 : vector<8xf32> to vector<8x1xf32>
    %cst_6 = arith.constant dense<0.000000e+00> : vector<1xf32>
    %9 = vector.multi_reduction <add>, %8, %cst_6 [0] : vector<8x1xf32> to vector<1xf32>
    %10 = vector.shape_cast %9 : vector<1xf32> to vector<1x1xf32>
    %cst_7 = arith.constant 5.120000e+02 : f32
    %11 = vector.broadcast %cst_7 : f32 to vector<1x1xf32>
    %12 = arith.divf %10, %11 : vector<1x1xf32>
    %13 = vector.broadcast %12 : vector<1x1xf32> to vector<8x128xf32>
    %14 = arith.subf %1, %13 : vector<8x128xf32>
    %15 = arith.mulf %14, %14 : vector<8x128xf32>
    %cst_8 = arith.constant dense<0.000000e+00> : vector<8xf32>
    %16 = vector.multi_reduction <add>, %15, %cst_8 [1] : vector<8x128xf32> to vector<8xf32>
    %17 = vector.shape_cast %16 : vector<8xf32> to vector<8x1xf32>
    %cst_9 = arith.constant dense<0.000000e+00> : vector<1xf32>
    %18 = vector.multi_reduction <add>, %17, %cst_9 [0] : vector<8x1xf32> to vector<1xf32>
    %19 = vector.shape_cast %18 : vector<1xf32> to vector<1x1xf32>
    %cst_10 = arith.constant 5.120000e+02 : f32
    %20 = vector.broadcast %cst_10 : f32 to vector<1x1xf32>
    %21 = arith.mulf %20, %12 : vector<1x1xf32>
    %22 = arith.mulf %21, %12 : vector<1x1xf32>
    %23 = arith.subf %19, %22 : vector<1x1xf32>
    %cst_11 = arith.constant 5.120000e+02 : f32
    %24 = vector.broadcast %cst_11 : f32 to vector<1x1xf32>
    %25 = arith.divf %23, %24 : vector<1x1xf32>
    %cst_12 = arith.constant 9.99999974E-6 : f32
    %26 = vector.broadcast %cst_12 : f32 to vector<1x1xf32>
    %27 = arith.addf %25, %26 : vector<1x1xf32>
    %28 = math.rsqrt %27 : vector<1x1xf32>
    %29 = vector.broadcast %28 : vector<1x1xf32> to vector<8x1xf32>
    %30 = arith.mulf %29, %5 : vector<8x1xf32>
    %31 = vector.broadcast %30 : vector<8x1xf32> to vector<8x128xf32>
    %32 = arith.mulf %14, %31 : vector<8x128xf32>
    %33 = vector.broadcast %6 : vector<8x1xf32> to vector<8x128xf32>
    %34 = arith.addf %32, %33 : vector<8x128xf32>
    %35 = arith.negf %34 : vector<8x128xf32>
    %36 = math.exp %35 : vector<8x128xf32>
    %cst_13 = arith.constant 1.000000e+00 : f32
    %37 = vector.broadcast %cst_13 : f32 to vector<8x128xf32>
    %38 = arith.addf %37, %36 : vector<8x128xf32>
    %39 = arith.divf %37, %38 : vector<8x128xf32>
    %40 = arith.mulf %34, %39 : vector<8x128xf32>
    %cst_14 = arith.constant 0.000000e+00 : f32
    %41 = vector.shape_cast %4 : vector<1x128xi1> to vector<1x128xi1>
    %42 = vector.broadcast %41 : vector<1x128xi1> to vector<8x128xi1>
    %43 = vector.broadcast %cst_14 : f32 to vector<8x128xf32>
    %44 = arith.select %42, %40, %43 : vector<8x128xi1>, vector<8x128xf32>
    %c0_15 = arith.constant 0 : index
    %c0_16 = arith.constant 0 : index
    %45 = vector.load %arg4[%c0_15, %c0_16] : memref<16x24xf32, #tpu.memory_space<vmem>>, vector<16x24xf32>
    %c1_i32 = arith.constant 1 : i32
    %46 = tpu.dynamic_rotate %44 by %c1_i32 dim 1 : vector<8x128xf32>, i32 -> vector<8x128xf32>
    %c127_i32 = arith.constant 127 : i32
    %47 = tpu.dynamic_rotate %44 by %c127_i32 dim 1 : vector<8x128xf32>, i32 -> vector<8x128xf32>
    %48 = tpu.concatenate %46, %44, %47 in 0 : vector<8x128xf32>, vector<8x128xf32>, vector<8x128xf32> -> vector<24x128xf32>
    %cst_17 = arith.constant dense<0.000000e+00> : vector<16x128xf32>
    %49 = tpu.matmul %45, %48, %cst_17 {dimension_numbers = #tpu.dot_dimension_numbers<[1], [0], [0], [1], [0, 0, 1, 1], [], []>} : vector<16x24xf32>, vector<24x128xf32>, vector<16x128xf32> -> vector<16x128xf32>
    %c0_18 = arith.constant 0 : index
    %c0_19 = arith.constant 0 : index
    %50 = vector.load %arg5[%c0_18, %c0_19] : memref<16x1xf32, #tpu.memory_space<vmem>>, vector<16x1xf32>
    %51 = vector.broadcast %50 : vector<16x1xf32> to vector<16x128xf32>
    %52 = arith.addf %49, %51 : vector<16x128xf32>
    %cst_20 = arith.constant 0.000000e+00 : f32
    %53 = vector.shape_cast %4 : vector<1x128xi1> to vector<1x128xi1>
    %54 = vector.broadcast %53 : vector<1x128xi1> to vector<16x128xi1>
    %55 = vector.broadcast %cst_20 : f32 to vector<16x128xf32>
    %56 = arith.select %54, %52, %55 : vector<16x128xi1>, vector<16x128xf32>
    %c0_21 = arith.constant 0 : index
    %c0_22 = arith.constant 0 : index
    %57 = vector.load %arg6[%c0_21, %c0_22] : memref<16x1xf32, #tpu.memory_space<vmem>>, vector<16x1xf32>
    %c0_23 = arith.constant 0 : index
    %c0_24 = arith.constant 0 : index
    %58 = vector.load %arg7[%c0_23, %c0_24] : memref<16x1xf32, #tpu.memory_space<vmem>>, vector<16x1xf32>
    %cst_25 = arith.constant dense<0.000000e+00> : vector<16xf32>
    %59 = vector.multi_reduction <add>, %56, %cst_25 [1] : vector<16x128xf32> to vector<16xf32>
    %60 = vector.shape_cast %59 : vector<16xf32> to vector<16x1xf32>
    %cst_26 = arith.constant dense<0.000000e+00> : vector<1xf32>
    %61 = vector.multi_reduction <add>, %60, %cst_26 [0] : vector<16x1xf32> to vector<1xf32>
    %62 = vector.shape_cast %61 : vector<1xf32> to vector<1x1xf32>
    %cst_27 = arith.constant 1.024000e+03 : f32
    %63 = vector.broadcast %cst_27 : f32 to vector<1x1xf32>
    %64 = arith.divf %62, %63 : vector<1x1xf32>
    %65 = vector.broadcast %64 : vector<1x1xf32> to vector<16x128xf32>
    %66 = arith.subf %56, %65 : vector<16x128xf32>
    %67 = arith.mulf %66, %66 : vector<16x128xf32>
    %cst_28 = arith.constant dense<0.000000e+00> : vector<16xf32>
    %68 = vector.multi_reduction <add>, %67, %cst_28 [1] : vector<16x128xf32> to vector<16xf32>
    %69 = vector.shape_cast %68 : vector<16xf32> to vector<16x1xf32>
    %cst_29 = arith.constant dense<0.000000e+00> : vector<1xf32>
    %70 = vector.multi_reduction <add>, %69, %cst_29 [0] : vector<16x1xf32> to vector<1xf32>
    %71 = vector.shape_cast %70 : vector<1xf32> to vector<1x1xf32>
    %cst_30 = arith.constant 1.024000e+03 : f32
    %72 = vector.broadcast %cst_30 : f32 to vector<1x1xf32>
    %73 = arith.mulf %72, %64 : vector<1x1xf32>
    %74 = arith.mulf %73, %64 : vector<1x1xf32>
    %75 = arith.subf %71, %74 : vector<1x1xf32>
    %cst_31 = arith.constant 1.024000e+03 : f32
    %76 = vector.broadcast %cst_31 : f32 to vector<1x1xf32>
    %77 = arith.divf %75, %76 : vector<1x1xf32>
    %cst_32 = arith.constant 9.99999974E-6 : f32
    %78 = vector.broadcast %cst_32 : f32 to vector<1x1xf32>
    %79 = arith.addf %77, %78 : vector<1x1xf32>
    %80 = math.rsqrt %79 : vector<1x1xf32>
    %81 = vector.broadcast %80 : vector<1x1xf32> to vector<16x1xf32>
    %82 = arith.mulf %81, %57 : vector<16x1xf32>
    %83 = vector.broadcast %82 : vector<16x1xf32> to vector<16x128xf32>
    %84 = arith.mulf %66, %83 : vector<16x128xf32>
    %85 = vector.broadcast %58 : vector<16x1xf32> to vector<16x128xf32>
    %86 = arith.addf %84, %85 : vector<16x128xf32>
    %87 = arith.negf %86 : vector<16x128xf32>
    %88 = math.exp %87 : vector<16x128xf32>
    %cst_33 = arith.constant 1.000000e+00 : f32
    %89 = vector.broadcast %cst_33 : f32 to vector<16x128xf32>
    %90 = arith.addf %89, %88 : vector<16x128xf32>
    %91 = arith.divf %89, %90 : vector<16x128xf32>
    %92 = arith.mulf %86, %91 : vector<16x128xf32>
    %cst_34 = arith.constant 0.000000e+00 : f32
    %93 = vector.shape_cast %4 : vector<1x128xi1> to vector<1x128xi1>
    %94 = vector.broadcast %93 : vector<1x128xi1> to vector<16x128xi1>
    %95 = vector.broadcast %cst_34 : f32 to vector<16x128xf32>
    %96 = arith.select %94, %92, %95 : vector<16x128xi1>, vector<16x128xf32>
    %c0_35 = arith.constant 0 : index
    %c0_36 = arith.constant 0 : index
    %97 = vector.load %arg8[%c0_35, %c0_36] : memref<16x56xf32, #tpu.memory_space<vmem>>, vector<16x56xf32>
    %c1_i32_37 = arith.constant 1 : i32
    %98 = tpu.dynamic_rotate %96 by %c1_i32_37 dim 1 : vector<16x128xf32>, i32 -> vector<16x128xf32>
    %c127_i32_38 = arith.constant 127 : i32
    %99 = tpu.dynamic_rotate %96 by %c127_i32_38 dim 1 : vector<16x128xf32>, i32 -> vector<16x128xf32>
    %100 = tpu.concatenate %98, %96, %99, %1 in 0 : vector<16x128xf32>, vector<16x128xf32>, vector<16x128xf32>, vector<8x128xf32> -> vector<56x128xf32>
    %cst_39 = arith.constant dense<0.000000e+00> : vector<16x128xf32>
    %101 = tpu.matmul %97, %100, %cst_39 {dimension_numbers = #tpu.dot_dimension_numbers<[1], [0], [0], [1], [0, 0, 1, 1], [], []>} : vector<16x56xf32>, vector<56x128xf32>, vector<16x128xf32> -> vector<16x128xf32>
    %c0_40 = arith.constant 0 : index
    %c0_41 = arith.constant 0 : index
    %102 = vector.load %arg9[%c0_40, %c0_41] : memref<16x1xf32, #tpu.memory_space<vmem>>, vector<16x1xf32>
    %103 = vector.broadcast %102 : vector<16x1xf32> to vector<16x128xf32>
    %104 = arith.addf %101, %103 : vector<16x128xf32>
    %cst_42 = arith.constant 0.000000e+00 : f32
    %105 = vector.shape_cast %4 : vector<1x128xi1> to vector<1x128xi1>
    %106 = vector.broadcast %105 : vector<1x128xi1> to vector<16x128xi1>
    %107 = vector.broadcast %cst_42 : f32 to vector<16x128xf32>
    %108 = arith.select %106, %104, %107 : vector<16x128xi1>, vector<16x128xf32>
    %c0_43 = arith.constant 0 : index
    %c0_44 = arith.constant 0 : index
    %c0_45 = arith.constant 0 : index
    %109 = vector.load %arg10[%c0_43, %c0_44, %c0_45] : memref<1x16x128xf32, #tpu.memory_space<vmem>>, vector<1x16x128xf32>
    %110 = vector.shape_cast %109 : vector<1x16x128xf32> to vector<16x128xf32>
    %111 = vector.shape_cast %108 : vector<16x128xf32> to vector<1x16x128xf32>
    tpu.vector_store %arg10[%c0_43, %c0_44, %c0_45], %111 {strides = array<i32>} : memref<1x16x128xf32, #tpu.memory_space<vmem>>, vector<1x16x128xf32>,
    return
  }
  func.func @transform_0(%arg0: i32) -> (i32, i32, i32) {
    %c0_i32 = arith.constant 0 : i32
    %c0_i32_0 = arith.constant 0 : i32
    %c0_i32_1 = arith.constant 0 : i32
    return %arg0, %c0_i32, %c0_i32_0 : i32, i32, i32
  }
  func.func @transform_1(%arg0: i32) -> (i32, i32) {
    %c0_i32 = arith.constant 0 : i32
    %c0_i32_0 = arith.constant 0 : i32
    %c0_i32_1 = arith.constant 0 : i32
    return %c0_i32, %c0_i32_0 : i32, i32
  }
  func.func @transform_2(%arg0: i32) -> (i32, i32) {
    %c0_i32 = arith.constant 0 : i32
    %c0_i32_0 = arith.constant 0 : i32
    %c0_i32_1 = arith.constant 0 : i32
    return %c0_i32, %c0_i32_0 : i32, i32
  }
  func.func @transform_3(%arg0: i32) -> (i32, i32) {
    %c0_i32 = arith.constant 0 : i32
    %c0_i32_0 = arith.constant 0 : i32
    %c0_i32_1 = arith.constant 0 : i32
    return %c0_i32, %c0_i32_0 : i32, i32
  }
  func.func @transform_4(%arg0: i32) -> (i32, i32) {
    %c0_i32 = arith.constant 0 : i32
    %c0_i32_0 = arith.constant 0 : i32
    %c0_i32_1 = arith.constant 0 : i32
    return %c0_i32, %c0_i32_0 : i32, i32
  }
  func.func @transform_5(%arg0: i32) -> (i32, i32) {
    %c0_i32 = arith.constant 0 : i32
    %c0_i32_0 = arith.constant 0 : i32
    %c0_i32_1 = arith.constant 0 : i32
    return %c0_i32, %c0_i32_0 : i32, i32
  }
  func.func @transform_6(%arg0: i32) -> (i32, i32) {
    %c0_i32 = arith.constant 0 : i32
    %c0_i32_0 = arith.constant 0 : i32
    %c0_i32_1 = arith.constant 0 : i32
    return %c0_i32, %c0_i32_0 : i32, i32
  }
  func.func @transform_7(%arg0: i32) -> (i32, i32) {
    %c0_i32 = arith.constant 0 : i32
    %c0_i32_0 = arith.constant 0 : i32
    %c0_i32_1 = arith.constant 0 : i32
    return %c0_i32, %c0_i32_0 : i32, i32
  }
  func.func @transform_8(%arg0: i32) -> (i32, i32) {
    %c0_i32 = arith.constant 0 : i32
    %c0_i32_0 = arith.constant 0 : i32
    %c0_i32_1 = arith.constant 0 : i32
    return %c0_i32, %c0_i32_0 : i32, i32
  }
  func.func @transform_9(%arg0: i32) -> (i32, i32, i32) {
    %c0_i32 = arith.constant 0 : i32
    %c0_i32_0 = arith.constant 0 : i32
    %c0_i32_1 = arith.constant 0 : i32
    return %arg0, %c0_i32, %c0_i32_0 : i32, i32, i32
  }
}

</mosaic_0001>

<llo_original>
// kernel: patcher_forward.1
$region0: #{patcher_forward.1}
  #allocation0 [shape = 'u32[]', space=smem, size = 0x4, offset = 0x4, fixed_abs, tag = 'smem constant byte address 0x4 - core index']
  #allocation1 [shape = 'u32[144,128]{1,0:T(1,128)}', space=vmem, size = 0x12000, scoped, tag = 'internal scratch']
  %s0 = inlined_call_operand.vmem [shape: f32[2,8,128], index: 0, kind: input, shape index: {}]
  %s1 = inlined_call_operand.vmem [shape: f32[8,1], index: 1, kind: input, shape index: {}]
  %s2 = inlined_call_operand.vmem [shape: f32[8,1], index: 2, kind: input, shape index: {}]
  %s3 = inlined_call_operand.vmem [shape: f32[16,24], index: 3, kind: input, shape index: {}]
  %s4 = inlined_call_operand.vmem [shape: f32[16,1], index: 4, kind: input, shape index: {}]
  %s5 = inlined_call_operand.vmem [shape: f32[16,1], index: 5, kind: input, shape index: {}]
  %s6 = inlined_call_operand.vmem [shape: f32[16,1], index: 6, kind: input, shape index: {}]
  %s7 = inlined_call_operand.vmem [shape: f32[16,56], index: 7, kind: input, shape index: {}]
  %s8 = inlined_call_operand.vmem [shape: f32[16,1], index: 8, kind: input, shape index: {}]
  %s9 = inlined_call_operand.vmem [shape: f32[2,16,128], index: 9, kind: output, shape index: {}]
  %s10 = sld [smem:[#allocation0]]
  $region69: #{patcher_forward.1} parent=0
    _
  %s12 = ssub.s32 1, %s10
  %s13 = scalar_select 0, %s12, %s10
  loop: start=0, step=1, limit=4
  $region2: #{patcher_forward.1} parent=0 // loop_pre_header
    _
  $region3: #{patcher_forward.1} parent=0 // loop_header
    %s15 = sphi 0, %s19
    %p16 = scmp.ge.s32.totalorder %s15, 4
    %s25 = sphi 0, %s27
    %s28 = sphi 0, %s25
    %s29 = sphi 0, %s28
    %s45 = sphi 0, %s29
    %s49 = sphi 0, %s49
    %s51 = sphi 0, %s49
    %s52 = sphi 0, %s51
    %s66 = sphi 0, %s52
    %s70 = sphi 0, %s70
    %s72 = sphi 0, %s70
    %s73 = sphi 0, %s72
    %s87 = sphi 0, %s73
    %s91 = sphi 0, %s91
    %s93 = sphi 0, %s91
    %s94 = sphi 0, %s93
    %s108 = sphi 0, %s94
    %s112 = sphi 0, %s112
    %s114 = sphi 0, %s112
    %s115 = sphi 0, %s114
    %s129 = sphi 0, %s115
    %s133 = sphi 0, %s133
    %s135 = sphi 0, %s133
    %s136 = sphi 0, %s135
    %s150 = sphi 0, %s136
    %s154 = sphi 0, %s154
    %s156 = sphi 0, %s154
    %s157 = sphi 0, %s156
    %s171 = sphi 0, %s157
    %s175 = sphi 0, %s175
    %s177 = sphi 0, %s175
    %s178 = sphi 0, %s177
    %s192 = sphi 0, %s178
    %s196 = sphi 0, %s196
    %s198 = sphi 0, %s196
    %s199 = sphi 0, %s198
    %s213 = sphi 0, %s199
    %s219 = sphi 0, %s221
    %s222 = sphi 0, %s219
    %s223 = sphi 0, %s222
    %s239 = sphi 0, %s223
  $region4: #{patcher_forward.1} parent=0 // loop_header_branch
    %18 = sbr.rel (%p16) target = $region8
  $region5: #{patcher_forward.1} parent=0 // loop_body
    %s20 = ssub.s32 %s15, 1
    %s21 = ssub.s32 %s15, 2
    %s22 = sadd.s32 %s15, 1
    %s23 = ssub.s32 %s15, %s22
    %p24 = scmp.eq.s32.totalorder %s23, 0
    %s26 = sadd.s32 %s25, 1
    %s27 = scalar_select %p24, %s25, %s26
    %p30 = pneg %p24
    %p31 = scmp.eq.s32.totalorder %s15, 1
    %p32 = por %p30, %p31
    %p33 = scmp.ne.s32.totalorder %s25, %s28
    %p34 = scmp.eq.s32.totalorder %s15, 0
    %p35 = por %p33, %p34
    %p36 = scmp.ne.s32.totalorder %s25, %s28
    %p37 = scmp.eq.s32.totalorder %s20, 1
    %p38 = por %p36, %p37
    %p39 = scmp.ne.s32.totalorder %s28, %s29
    %p40 = scmp.eq.s32.totalorder %s20, 0
    %p41 = por %p39, %p40
    %p42 = scmp.ne.s32.totalorder %s28, %s29
    %p43 = scmp.eq.s32.totalorder %s21, 1
    %p44 = por %p42, %p43
    %p46 = scmp.ne.s32.totalorder %s29, %s45
    %p47 = scmp.eq.s32.totalorder %s21, 0
    %p48 = por %p46, %p47
    %s50 = sadd.s32 %s49, 1
    %p53 = scmp.eq.s32.totalorder %s15, 1
    %p54 = scmp.ne.s32.totalorder %s49, %s51
    %p55 = scmp.eq.s32.totalorder %s15, 0
    %p56 = por %p54, %p55
    %p57 = scmp.ne.s32.totalorder %s49, %s51
    %p58 = scmp.eq.s32.totalorder %s20, 1
    %p59 = por %p57, %p58
    %p60 = scmp.ne.s32.totalorder %s51, %s52
    %p61 = scmp.eq.s32.totalorder %s20, 0
    %p62 = por %p60, %p61
    %p63 = scmp.ne.s32.totalorder %s51, %s52
    %p64 = scmp.eq.s32.totalorder %s21, 1
    %p65 = por %p63, %p64
    %p67 = scmp.ne.s32.totalorder %s52, %s66
    %p68 = scmp.eq.s32.totalorder %s21, 0
    %p69 = por %p67, %p68
    %s71 = sadd.s32 %s70, 1
    %p74 = scmp.eq.s32.totalorder %s15, 1
    %p75 = scmp.ne.s32.totalorder %s70, %s72
    %p76 = scmp.eq.s32.totalorder %s15, 0
    %p77 = por %p75, %p76
    %p78 = scmp.ne.s32.totalorder %s70, %s72
    %p79 = scmp.eq.s32.totalorder %s20, 1
    %p80 = por %p78, %p79
    %p81 = scmp.ne.s32.totalorder %s72, %s73
    %p82 = scmp.eq.s32.totalorder %s20, 0
    %p83 = por %p81, %p82
    %p84 = scmp.ne.s32.totalorder %s72, %s73
    %p85 = scmp.eq.s32.totalorder %s21, 1
    %p86 = por %p84, %p85
    %p88 = scmp.ne.s32.totalorder %s73, %s87
    %p89 = scmp.eq.s32.totalorder %s21, 0
    %p90 = por %p88, %p89
    %s92 = sadd.s32 %s91, 1
    %p95 = scmp.eq.s32.totalorder %s15, 1
    %p96 = scmp.ne.s32.totalorder %s91, %s93
    %p97 = scmp.eq.s32.totalorder %s15, 0
    %p98 = por %p96, %p97
    %p99 = scmp.ne.s32.totalorder %s91, %s93
    %p100 = scmp.eq.s32.totalorder %s20, 1
    %p101 = por %p99, %p100
    %p102 = scmp.ne.s32.totalorder %s93, %s94
    %p103 = scmp.eq.s32.totalorder %s20, 0
    %p104 = por %p102, %p103
    %p105 = scmp.ne.s32.totalorder %s93, %s94
    %p106 = scmp.eq.s32.totalorder %s21, 1
    %p107 = por %p105, %p106
    %p109 = scmp.ne.s32.totalorder %s94, %s108
    %p110 = scmp.eq.s32.totalorder %s21, 0
    %p111 = por %p109, %p110
    %s113 = sadd.s32 %s112, 1
    %p116 = scmp.eq.s32.totalorder %s15, 1
    %p117 = scmp.ne.s32.totalorder %s112, %s114
    %p118 = scmp.eq.s32.totalorder %s15, 0
    %p119 = por %p117, %p118
    %p120 = scmp.ne.s32.totalorder %s112, %s114
    %p121 = scmp.eq.s32.totalorder %s20, 1
    %p122 = por %p120, %p121
    %p123 = scmp.ne.s32.totalorder %s114, %s115
    %p124 = scmp.eq.s32.totalorder %s20, 0
    %p125 = por %p123, %p124
    %p126 = scmp.ne.s32.totalorder %s114, %s115
    %p127 = scmp.eq.s32.totalorder %s21, 1
    %p128 = por %p126, %p127
    %p130 = scmp.ne.s32.totalorder %s115, %s129
    %p131 = scmp.eq.s32.totalorder %s21, 0
    %p132 = por %p130, %p131
    %s134 = sadd.s32 %s133, 1
    %p137 = scmp.eq.s32.totalorder %s15, 1
    %p138 = scmp.ne.s32.totalorder %s133, %s135
    %p139 = scmp.eq.s32.totalorder %s15, 0
    %p140 = por %p138, %p139
    %p141 = scmp.ne.s32.totalorder %s133, %s135
    %p142 = scmp.eq.s32.totalorder %s20, 1
    %p143 = por %p141, %p142
    %p144 = scmp.ne.s32.totalorder %s135, %s136
    %p145 = scmp.eq.s32.totalorder %s20, 0
    %p146 = por %p144, %p145
    %p147 = scmp.ne.s32.totalorder %s135, %s136
    %p148 = scmp.eq.s32.totalorder %s21, 1
    %p149 = por %p147, %p148
    %p151 = scmp.ne.s32.totalorder %s136, %s150
    %p152 = scmp.eq.s32.totalorder %s21, 0
    %p153 = por %p151, %p152
    %s155 = sadd.s32 %s154, 1
    %p158 = scmp.eq.s32.totalorder %s15, 1
    %p159 = scmp.ne.s32.totalorder %s154, %s156
    %p160 = scmp.eq.s32.totalorder %s15, 0
    %p161 = por %p159, %p160
    %p162 = scmp.ne.s32.totalorder %s154, %s156
    %p163 = scmp.eq.s32.totalorder %s20, 1
    %p164 = por %p162, %p163
    %p165 = scmp.ne.s32.totalorder %s156, %s157
    %p166 = scmp.eq.s32.totalorder %s20, 0
    %p167 = por %p165, %p166
    %p168 = scmp.ne.s32.totalorder %s156, %s157
    %p169 = scmp.eq.s32.totalorder %s21, 1
    %p170 = por %p168, %p169
    %p172 = scmp.ne.s32.totalorder %s157, %s171
    %p173 = scmp.eq.s32.totalorder %s21, 0
    %p174 = por %p172, %p173
    %s176 = sadd.s32 %s175, 1
    %p179 = scmp.eq.s32.totalorder %s15, 1
    %p180 = scmp.ne.s32.totalorder %s175, %s177
    %p181 = scmp.eq.s32.totalorder %s15, 0
    %p182 = por %p180, %p181
    %p183 = scmp.ne.s32.totalorder %s175, %s177
    %p184 = scmp.eq.s32.totalorder %s20, 1
    %p185 = por %p183, %p184
    %p186 = scmp.ne.s32.totalorder %s177, %s178
    %p187 = scmp.eq.s32.totalorder %s20, 0
    %p188 = por %p186, %p187
    %p189 = scmp.ne.s32.totalorder %s177, %s178
    %p190 = scmp.eq.s32.totalorder %s21, 1
    %p191 = por %p189, %p190
    %p193 = scmp.ne.s32.totalorder %s178, %s192
    %p194 = scmp.eq.s32.totalorder %s21, 0
    %p195 = por %p193, %p194
    %s197 = sadd.s32 %s196, 1
    %p200 = scmp.eq.s32.totalorder %s15, 1
    %p201 = scmp.ne.s32.totalorder %s196, %s198
    %p202 = scmp.eq.s32.totalorder %s15, 0
    %p203 = por %p201, %p202
    %p204 = scmp.ne.s32.totalorder %s196, %s198
    %p205 = scmp.eq.s32.totalorder %s20, 1
    %p206 = por %p204, %p205
    %p207 = scmp.ne.s32.totalorder %s198, %s199
    %p208 = scmp.eq.s32.totalorder %s20, 0
    %p209 = por %p207, %p208
    %p210 = scmp.ne.s32.totalorder %s198, %s199
    %p211 = scmp.eq.s32.totalorder %s21, 1
    %p212 = por %p210, %p211
    %p214 = scmp.ne.s32.totalorder %s199, %s213
    %p215 = scmp.eq.s32.totalorder %s21, 0
    %p216 = por %p214, %p215
    %s217 = ssub.s32 %s15, %s22
    %p218 = scmp.eq.s32.totalorder %s217, 0
    %s220 = sadd.s32 %s219, 1
    %s221 = scalar_select %p218, %s219, %s220
    %p224 = pneg %p218
    %p225 = scmp.eq.s32.totalorder %s15, 1
    %p226 = por %p224, %p225
    %p227 = scmp.ne.s32.totalorder %s219, %s222
    %p228 = scmp.eq.s32.totalorder %s15, 0
    %p229 = por %p227, %p228
    %p230 = scmp.ne.s32.totalorder %s219, %s222
    %p231 = scmp.eq.s32.totalorder %s20, 1
    %p232 = por %p230, %p231
    %p233 = scmp.ne.s32.totalorder %s222, %s223
    %p234 = scmp.eq.s32.totalorder %s20, 0
    %p235 = por %p233, %p234
    %p236 = scmp.ne.s32.totalorder %s222, %s223
    %p237 = scmp.eq.s32.totalorder %s21, 1
    %p238 = por %p236, %p237
    %p240 = scmp.ne.s32.totalorder %s223, %s239
    %p241 = scmp.eq.s32.totalorder %s21, 0
    %p242 = por %p240, %p241
    %p243 = scmp.le.s32.totalorder 1, %s15
    %p244 = scmp.lt.s32.totalorder %s15, 3
    %p245 = pnand %p243, %p244
    %p246 = pneg %p245
    // Predicated region
    $region9: #{patcher_forward.1} parent=5 // pred_check
      _
    $region10: #{patcher_forward.1} parent=5 // pred_check_branch
      %248 = sbr.rel (%p245) target = $region12
    $region11: #{patcher_forward.1} parent=5 // pred_region
      %s249 = ssub.s32 %s15, 1
      // Predicated region
      $region13: #{patcher_forward.1} parent=11 // pred_check
        %p250 = pneg %p62
      $region14: #{patcher_forward.1} parent=11 // pred_check_branch
        %252 = sbr.rel (%p250) target = $region16
      $region15: #{patcher_forward.1} parent=11 // pred_region
        _
      $region16: #{patcher_forward.1} parent=11 // pred_fallthru
        _
      // Predicated region
      $region17: #{patcher_forward.1} parent=11 // pred_check
        %p253 = pneg %p83
      $region18: #{patcher_forward.1} parent=11 // pred_check_branch
        %255 = sbr.rel (%p253) target = $region20
      $region19: #{patcher_forward.1} parent=11 // pred_region
        _
      $region20: #{patcher_forward.1} parent=11 // pred_fallthru
        _
      // Predicated region
      $region21: #{patcher_forward.1} parent=11 // pred_check
        %p256 = pneg %p104
      $region22: #{patcher_forward.1} parent=11 // pred_check_branch
        %258 = sbr.rel (%p256) target = $region24
      $region23: #{patcher_forward.1} parent=11 // pred_region
        _
      $region24: #{patcher_forward.1} parent=11 // pred_fallthru
        _
      // Predicated region
      $region25: #{patcher_forward.1} parent=11 // pred_check
        %p259 = pneg %p125
      $region26: #{patcher_forward.1} parent=11 // pred_check_branch
        %261 = sbr.rel (%p259) target = $region28
      $region27: #{patcher_forward.1} parent=11 // pred_region
        _
      $region28: #{patcher_forward.1} parent=11 // pred_fallthru
        _
      // Predicated region
      $region29: #{patcher_forward.1} parent=11 // pred_check
        %p262 = pneg %p146
      $region30: #{patcher_forward.1} parent=11 // pred_check_branch
        %264 = sbr.rel (%p262) target = $region32
      $region31: #{patcher_forward.1} parent=11 // pred_region
        _
      $region32: #{patcher_forward.1} parent=11 // pred_fallthru
        _
      // Predicated region
      $region33: #{patcher_forward.1} parent=11 // pred_check
        %p265 = pneg %p167
      $region34: #{patcher_forward.1} parent=11 // pred_check_branch
        %267 = sbr.rel (%p265) target = $region36
      $region35: #{patcher_forward.1} parent=11 // pred_region
        _
      $region36: #{patcher_forward.1} parent=11 // pred_fallthru
        _
      // Predicated region
      $region37: #{patcher_forward.1} parent=11 // pred_check
        %p268 = pneg %p188
      $region38: #{patcher_forward.1} parent=11 // pred_check_branch
        %270 = sbr.rel (%p268) target = $region40
      $region39: #{patcher_forward.1} parent=11 // pred_region
        _
      $region40: #{patcher_forward.1} parent=11 // pred_fallthru
        _
      // Predicated region
      $region41: #{patcher_forward.1} parent=11 // pred_check
        %p271 = pneg %p209
      $region42: #{patcher_forward.1} parent=11 // pred_check_branch
        %273 = sbr.rel (%p271) target = $region44
      $region43: #{patcher_forward.1} parent=11 // pred_region
        _
      $region44: #{patcher_forward.1} parent=11 // pred_fallthru
        _
    $region12: #{patcher_forward.1} parent=5 // pred_fallthru
      _
    %p274 = scmp.lt.s32.totalorder %s15, 2
    // Predicated region
    $region45: #{patcher_forward.1} parent=5 // pred_check
      %p275 = pneg %p274
    $region46: #{patcher_forward.1} parent=5 // pred_check_branch
      %277 = sbr.rel (%p275) target = $region48
    $region47: #{patcher_forward.1} parent=5 // pred_region
      // Predicated region
      $region49: #{patcher_forward.1} parent=47 // pred_check
        %p278 = pneg %p35
      $region50: #{patcher_forward.1} parent=47 // pred_check_branch
        %280 = sbr.rel (%p278) target = $region52
      $region51: #{patcher_forward.1} parent=47 // pred_region
        %p281 = scmp.lt.s32.totalorder %s15, 1
        %s282 = scalar_select %p281, %s15, 1
        %s283 = smul.addr %s282, 8
        %s284 = scalar_lea.vmem %s0, %s283
      $region52: #{patcher_forward.1} parent=47 // pred_fallthru
        _
    $region48: #{patcher_forward.1} parent=5 // pred_fallthru
      _
    %p285 = scmp.le.s32.totalorder 1, %s15
    %p286 = scmp.lt.s32.totalorder %s15, 3
    %p287 = pnand %p285, %p286
    %p288 = pneg %p287
    // Predicated region
    $region53: #{patcher_forward.1} parent=5 // pred_check
      _
    $region54: #{patcher_forward.1} parent=5 // pred_check_branch
      %290 = sbr.rel (%p287) target = $region56
    $region55: #{patcher_forward.1} parent=5 // pred_region
      %s291 = ssub.s32 %s15, 1
      %p292 = scmp.lt.s32.totalorder %s20, 1
      %s293 = scalar_select %p292, %s20, 1
      %s294 = smul.addr %s293, 8
      %s295 = scalar_lea.vmem %s0, %s294
      %p296 = pneg %p41
      %p297 = pneg %p38
      %p298 = pneg %p62
      %p299 = pneg %p59
      %p300 = pneg %p83
      %p301 = pneg %p80
      %p302 = pneg %p104
      %p303 = pneg %p101
      %p304 = pneg %p125
      %p305 = pneg %p122
      %p306 = pneg %p146
      %p307 = pneg %p143
      %p308 = pneg %p167
      %p309 = pneg %p164
      %p310 = pneg %p188
      %p311 = pneg %p185
      %p312 = pneg %p209
      %p313 = pneg %p206
      %p314 = pneg %p235
      %p315 = pneg %p232
      %p316 = scmp.lt.s32.totalorder %s20, 1
      %s317 = scalar_select %p316, %s20, 1
      %s318 = smul.addr %s317, 2
      %s319 = smul.addr %s318, 8
      %s320 = scalar_lea.vmem %s9, %s319
      %p321 = scmp.lt.s32.totalorder %s20, 1
      %s322 = scalar_select %p321, %s20, 1
      %s323 = smul.addr %s322, 8
      %s324 = scalar_lea.vmem %s0, %s323
      %p325 = scmp.lt.s32.totalorder %s20, 1
      %s326 = scalar_select %p325, %s20, 1
      %s327 = smul.addr %s326, 2
      %s328 = smul.addr %s327, 8
      %s329 = scalar_lea.vmem %s9, %s328
      %v330 = vld [vmem:[%s324] sm:$0xff]
      %v331 = vlaneseq
      %v332 = vand.u32 %v331, 127
      %vm333 = vcmp.lt.s32.totalorder %v332, 64
      %v334 = vld [vmem:[%s1] sm:$0xff]
      %v335 = vld [vmem:[%s2] sm:$0xff]
      %336 = vadd.xlane.f32.xlu0 %v330
      %v337 = vpop.xlane.xlu0 %336
      %v338 = vrot.slane %v337, 4
      %v339 = vadd.f32 %v337, %v338
      %v340 = vrot.slane %v339, 2
      %v341 = vadd.f32 %v339, %v340
      %v342 = vrot.slane %v341, 1
      %v343 = vadd.f32 %v341, %v342
      %v344 = vrcp.pop 512.0
      %v345 = vmul.f32 %v343, %v344
      %v346 = vsub.f32 %v330, %v345
      %v347 = vmul.f32 %v346, %v346
      %348 = vadd.xlane.f32.xlu0 %v347
      %v349 = vpop.xlane.xlu0 %348
      %v350 = vrot.slane %v349, 4
      %v351 = vadd.f32 %v349, %v350
      %v352 = vrot.slane %v351, 2
      %v353 = vadd.f32 %v351, %v352
      %v354 = vrot.slane %v353, 1
      %v355 = vadd.f32 %v353, %v354
      %v356 = vmul.f32 %v345, 512.0
      %v357 = vmul.f32 %v356, %v345
      %v358 = vsub.f32 %v355, %v357
      %v359 = vmul.f32 %v358, %v344
      %v360 = vadd.f32 %v359, 1e-05
      %v361 = vrsqrt.pop %v360
      %v362 = vmul.f32 %v361, %v334
      %364 = vset.pattern.permute.xlu0 0
      %365 = vperm.xlu0 %364, %v362
      %v366 = vpop.permute.xlu0 %365
      %v368 = vmul.f32 %v346, %v366
      %370 = vset.pattern.permute.xlu0 0
      %371 = vperm.xlu0 %370, %v335
      %v372 = vpop.permute.xlu0 %371
      %v374 = vadd.f32 %v368, %v372
      %v375 = vxor.u32 %v374, 2147483648
      %v376 = vmul.f32 %v375, 1.442695
      %v377 = vpow.pop %v376
      %v378 = vadd.f32 %v377, 1.0
      %v379 = vrcp.pop %v378
      %v380 = vmul.f32 1.0, %v379
      %v381 = vmul.f32 %v374, %v380
      %v382 = vsel %vm333, 1, 0
      %vm383 = vcmp.eq.s32.totalorder %v382, 1
      %v384 = vsel %vm383, %v381, 0.0
      %v385 = vld [vmem:[%s3] sm:$0xff]
      %v386 = vld [vmem:[%s3 + $0x8] sm:$0xff]
      %387 = vrot.lane.b32.xlu0 %v384, 1
      %v388 = vpop.permute.xlu0 %387
      %389 = vrot.lane.b32.xlu0 %v384, 127
      %v390 = vpop.permute.xlu0 %389
      %v391 = vld [vmem:[%s4] sm:$0xff]
      %v392 = vld [vmem:[%s4 + $0x8] sm:$0xff]
      %394 = vset.pattern.permute.xlu0 0
      %395 = vperm.xlu0 %394, %v391
      %v396 = vpop.permute.xlu0 %395
      %399 = vset.pattern.permute.xlu0 0
      %400 = vperm.xlu0 %399, %v392
      %v401 = vpop.permute.xlu0 %400
      %vm403 = vcmask 195584
      %v405 = vsel %vm403, %v385, 0
      %v408 = vsel %vm403, %v386, 0
      %410 = vmatprep.subr.mxu0 0.0
      %411 = vmatpush1.msra.mxu0 %v388
      %412 = vmatprep.subr.mxu0 0.0
      %413 = vmatpush1.msra.mxu0 %v384
      %414 = vmatprep.subr.mxu0 0.0
      %415 = vmatpush1.msra.mxu0 %v390
      %416 = vmatprep.subr.mxu0 0.0
      %417 = vmatpush1.msra.mxu0 0.0
      %418 = vmatprep.subr.mxu0 0.0
      %419 = vmatpush1.msra.mxu0 0.0
      %420 = vmatprep.subr.mxu0 0.0
      %421 = vmatpush1.msra.mxu0 0.0
      %422 = vmatprep.subr.mxu0 0.0
      %423 = vmatpush1.msra.mxu0 0.0
      %424 = vmatprep.subr.mxu0 0.0
      %425 = vmatpush1.msra.mxu0 0.0
      %426 = vmatprep.subr.mxu0 0.0
      %427 = vmatpush1.msra.mxu0 0.0
      %428 = vmatprep.subr.mxu0 0.0
      %429 = vmatpush1.msra.mxu0 0.0
      %430 = vmatprep.subr.mxu0 0.0
      %431 = vmatpush1.msra.mxu0 0.0
      %432 = vmatprep.subr.mxu0 0.0
      %433 = vmatpush1.msra.mxu0 0.0
      %434 = vmatprep.subr.mxu0 0.0
      %435 = vmatpush1.msra.mxu0 0.0
      %436 = vmatprep.subr.mxu0 0.0
      %437 = vmatpush1.msra.mxu0 0.0
      %438 = vmatprep.subr.mxu0 0.0
      %439 = vmatpush1.msra.mxu0 0.0
      %440 = vmatprep.subr.mxu0 0.0
      %441 = vmatpush1.msra.mxu0 0.0
      %442 = vmatprep.subr.mxu0 0.0
      %443 = vmatpush1.msra.mxu0 0.0
      %444 = vmatprep.subr.mxu0 0.0
      %445 = vmatpush1.msra.mxu0 0.0
      %446 = vmatprep.subr.mxu0 0.0
      %447 = vmatpush1.msra.mxu0 0.0
      %448 = vmatprep.subr.mxu0 0.0
      %449 = vmatpush1.msra.mxu0 0.0
      %450 = vmatprep.subr.mxu0 0.0
      %451 = vmatpush1.msra.mxu0 0.0
      %452 = vmatprep.subr.mxu0 0.0
      %453 = vmatpush1.msra.mxu0 0.0
      %454 = vmatprep.subr.mxu0 0.0
      %455 = vmatpush1.msra.mxu0 0.0
      %456 = vmatprep.subr.mxu0 0.0
      %457 = vmatpush1.msra.mxu0 0.0
      %458 = vmatprep.subr.mxu0 0.0
      %459 = vmatpush1.msra.mxu0 0.0
      %460 = vmatprep.subr.mxu0 0.0
      %461 = vmatpush1.msra.mxu0 0.0
      %462 = vmatprep.subr.mxu0 0.0
      %463 = vmatpush1.msra.mxu0 0.0
      %464 = vmatprep.subr.mxu0 0.0
      %465 = vmatpush1.msra.mxu0 0.0
      %466 = vmatprep.subr.mxu0 0.0
      %467 = vmatpush1.msra.mxu0 0.0
      %468 = vmatprep.subr.mxu0 0.0
      %469 = vmatpush1.msra.mxu0 0.0
      %470 = vmatprep.subr.mxu0 0.0
      %471 = vmatpush1.msra.mxu0 0.0
      %472 = vmatprep.subr.mxu0 0.0
      %473 = vmatpush1.msra.mxu0 0.0
      %474 = vmatprep.mubr.f32.mxu0 0.0
      %475 = vmatmul.mubr.f32.gmra.mrb[0].mxu0 %v405
      %v476 = vpop.f32.mrb[0].mxu0
      %v477 = vadd.f32 %v396, %v476
      %v478 = vpop.f32.mrb[0].mxu0
      %479 = vmatprep.mubr.f32.mxu0 0.0
      %480 = vmatmul.mubr.f32.gmra.mrb[0].mxu0 %v408
      %v481 = vpop.f32.mrb[0].mxu0
      %v482 = vadd.f32 %v401, %v481
      %v483 = vpop.f32.mrb[0].mxu0
      %484 = vdwg.mxu0
      %v485 = vsel %vm383, %v477, 0.0
      %v486 = vsel %vm383, %v482, 0.0
      %v487 = vld [vmem:[%s5] sm:$0xff]
      %v488 = vld [vmem:[%s5 + $0x8] sm:$0xff]
      %v489 = vld [vmem:[%s6] sm:$0xff]
      %v490 = vld [vmem:[%s6 + $0x8] sm:$0xff]
      %491 = vadd.xlane.f32.xlu0 %v485
      %v492 = vpop.xlane.xlu0 %491
      %493 = vadd.xlane.f32.xlu0 %v486
      %v494 = vpop.xlane.xlu0 %493
      %v495 = vadd.f32 %v492, %v494
      %v496 = vrot.slane %v495, 4
      %v497 = vadd.f32 %v495, %v496
      %v498 = vrot.slane %v497, 2
      %v499 = vadd.f32 %v497, %v498
      %v500 = vrot.slane %v499, 1
      %v501 = vadd.f32 %v499, %v500
      %v502 = vrcp.pop 1024.0
      %v503 = vmul.f32 %v501, %v502
      %v504 = vsub.f32 %v485, %v503
      %v505 = vsub.f32 %v486, %v503
      %v506 = vmul.f32 %v504, %v504
      %v507 = vmul.f32 %v505, %v505
      %508 = vadd.xlane.f32.xlu0 %v506
      %v509 = vpop.xlane.xlu0 %508
      %510 = vadd.xlane.f32.xlu0 %v507
      %v511 = vpop.xlane.xlu0 %510
      %v512 = vadd.f32 %v509, %v511
      %v513 = vrot.slane %v512, 4
      %v514 = vadd.f32 %v512, %v513
      %v515 = vrot.slane %v514, 2
      %v516 = vadd.f32 %v514, %v515
      %v517 = vrot.slane %v516, 1
      %v518 = vadd.f32 %v516, %v517
      %v519 = vmul.f32 %v503, 1024.0
      %v520 = vmul.f32 %v519, %v503
      %v521 = vsub.f32 %v518, %v520
      %v522 = vmul.f32 %v521, %v502
      %v523 = vadd.f32 %v522, 1e-05
      %v524 = vrsqrt.pop %v523
      %v525 = vmul.f32 %v524, %v487
      %v526 = vmul.f32 %v524, %v488
      %528 = vset.pattern.permute.xlu0 0
      %529 = vperm.xlu0 %528, %v525
      %v530 = vpop.permute.xlu0 %529
      %533 = vset.pattern.permute.xlu0 0
      %534 = vperm.xlu0 %533, %v526
      %v535 = vpop.permute.xlu0 %534
      %v537 = vmul.f32 %v504, %v530
      %v538 = vmul.f32 %v505, %v535
      %540 = vset.pattern.permute.xlu0 0
      %541 = vperm.xlu0 %540, %v489
      %v542 = vpop.permute.xlu0 %541
      %545 = vset.pattern.permute.xlu0 0
      %546 = vperm.xlu0 %545, %v490
      %v547 = vpop.permute.xlu0 %546
      %v549 = vadd.f32 %v537, %v542
      %v550 = vadd.f32 %v538, %v547
      %v551 = vxor.u32 %v549, 2147483648
      %v552 = vxor.u32 %v550, 2147483648
      %v553 = vmul.f32 %v551, 1.442695
      %v554 = vpow.pop %v553
      %v555 = vmul.f32 %v552, 1.442695
      %v556 = vpow.pop %v555
      %v557 = vadd.f32 %v554, 1.0
      %v558 = vadd.f32 %v556, 1.0
      %v559 = vrcp.pop %v557
      %v560 = vmul.f32 1.0, %v559
      %v561 = vrcp.pop %v558
      %v562 = vmul.f32 1.0, %v561
      %v563 = vmul.f32 %v549, %v560
      %v564 = vmul.f32 %v550, %v562
      %v565 = vsel %vm383, %v563, 0.0
      %v566 = vsel %vm383, %v564, 0.0
      %v567 = vld [vmem:[%s7] sm:$0xff]
      %v568 = vld [vmem:[%s7 + $0x8] sm:$0xff]
      %569 = vrot.lane.b32.xlu0 %v565, 1
      %v570 = vpop.permute.xlu0 %569
      %571 = vrot.lane.b32.xlu0 %v566, 1
      %v572 = vpop.permute.xlu0 %571
      %573 = vrot.lane.b32.xlu0 %v565, 127
      %v574 = vpop.permute.xlu0 %573
      %575 = vrot.lane.b32.xlu0 %v566, 127
      %v576 = vpop.permute.xlu0 %575
      %v577 = vld [vmem:[%s8] sm:$0xff]
      %v578 = vld [vmem:[%s8 + $0x8] sm:$0xff]
      %580 = vset.pattern.permute.xlu0 0
      %581 = vperm.xlu0 %580, %v577
      %v582 = vpop.permute.xlu0 %581
      %585 = vset.pattern.permute.xlu0 0
      %586 = vperm.xlu0 %585, %v578
      %v587 = vpop.permute.xlu0 %586
      %vm589 = vcmask 457728
      %v591 = vsel %vm589, %v567, 0
      %v594 = vsel %vm589, %v568, 0
      %596 = vmatprep.subr.mxu0 0.0
      %597 = vmatpush1.msra.mxu0 %v570
      %598 = vmatprep.subr.mxu0 0.0
      %599 = vmatpush1.msra.mxu0 %v572
      %600 = vmatprep.subr.mxu0 0.0
      %601 = vmatpush1.msra.mxu0 %v565
      %602 = vmatprep.subr.mxu0 0.0
      %603 = vmatpush1.msra.mxu0 %v566
      %604 = vmatprep.subr.mxu0 0.0
      %605 = vmatpush1.msra.mxu0 %v574
      %606 = vmatprep.subr.mxu0 0.0
      %607 = vmatpush1.msra.mxu0 %v576
      %608 = vmatprep.subr.mxu0 0.0
      %609 = vmatpush1.msra.mxu0 %v330
      %610 = vmatprep.subr.mxu0 0.0
      %611 = vmatpush1.msra.mxu0 0.0
      %612 = vmatprep.subr.mxu0 0.0
      %613 = vmatpush1.msra.mxu0 0.0
      %614 = vmatprep.subr.mxu0 0.0
      %615 = vmatpush1.msra.mxu0 0.0
      %616 = vmatprep.subr.mxu0 0.0
      %617 = vmatpush1.msra.mxu0 0.0
      %618 = vmatprep.subr.mxu0 0.0
      %619 = vmatpush1.msra.mxu0 0.0
      %620 = vmatprep.subr.mxu0 0.0
      %621 = vmatpush1.msra.mxu0 0.0
      %622 = vmatprep.subr.mxu0 0.0
      %623 = vmatpush1.msra.mxu0 0.0
      %624 = vmatprep.subr.mxu0 0.0
      %625 = vmatpush1.msra.mxu0 0.0
      %626 = vmatprep.subr.mxu0 0.0
      %627 = vmatpush1.msra.mxu0 0.0
      %628 = vmatprep.subr.mxu0 0.0
      %629 = vmatpush1.msra.mxu0 0.0
      %630 = vmatprep.subr.mxu0 0.0
      %631 = vmatpush1.msra.mxu0 0.0
      %632 = vmatprep.subr.mxu0 0.0
      %633 = vmatpush1.msra.mxu0 0.0
      %634 = vmatprep.subr.mxu0 0.0
      %635 = vmatpush1.msra.mxu0 0.0
      %636 = vmatprep.subr.mxu0 0.0
      %637 = vmatpush1.msra.mxu0 0.0
      %638 = vmatprep.subr.mxu0 0.0
      %639 = vmatpush1.msra.mxu0 0.0
      %640 = vmatprep.subr.mxu0 0.0
      %641 = vmatpush1.msra.mxu0 0.0
      %642 = vmatprep.subr.mxu0 0.0
      %643 = vmatpush1.msra.mxu0 0.0
      %644 = vmatprep.subr.mxu0 0.0
      %645 = vmatpush1.msra.mxu0 0.0
      %646 = vmatprep.subr.mxu0 0.0
      %647 = vmatpush1.msra.mxu0 0.0
      %648 = vmatprep.subr.mxu0 0.0
      %649 = vmatpush1.msra.mxu0 0.0
      %650 = vmatprep.subr.mxu0 0.0
      %651 = vmatpush1.msra.mxu0 0.0
      %652 = vmatprep.subr.mxu0 0.0
      %653 = vmatpush1.msra.mxu0 0.0
      %654 = vmatprep.subr.mxu0 0.0
      %655 = vmatpush1.msra.mxu0 0.0
      %656 = vmatprep.subr.mxu0 0.0
      %657 = vmatpush1.msra.mxu0 0.0
      %658 = vmatprep.subr.mxu0 0.0
      %659 = vmatpush1.msra.mxu0 0.0
      %660 = vmatprep.mubr.f32.mxu0 0.0
      %661 = vmatmul.mubr.f32.gmra.mrb[0].mxu0 %v591
      %v662 = vpop.f32.mrb[0].mxu0
      %v663 = vadd.f32 %v582, %v662
      %v664 = vpop.f32.mrb[0].mxu0
      %665 = vmatprep.mubr.f32.mxu0 0.0
      %666 = vmatmul.mubr.f32.gmra.mrb[0].mxu0 %v594
      %v667 = vpop.f32.mrb[0].mxu0
      %v668 = vadd.f32 %v587, %v667
      %v669 = vpop.f32.mrb[0].mxu0
      %670 = vdwg.mxu0
      %v671 = vsel %vm383, %v663, 0.0
      %v672 = vsel %vm383, %v668, 0.0
      %673 = vst [vmem:[%s329] sm:$0xff] %v671
      %674 = vst [vmem:[%s329 + $0x8] sm:$0xff] %v672
      %p675 = scmp.lt.s32.totalorder %s20, 1
      %s676 = scalar_select %p675, %s20, 1
      %s677 = smul.addr %s676, 2
      %s678 = smul.addr %s677, 8
      %s679 = scalar_lea.vmem %s9, %s678
      // Predicated region
      $region57: #{patcher_forward.1} parent=55 // pred_check
        %p680 = pneg %p232
      $region58: #{patcher_forward.1} parent=55 // pred_check_branch
        %682 = sbr.rel (%p680) target = $region60
      $region59: #{patcher_forward.1} parent=55 // pred_region
        _
      $region60: #{patcher_forward.1} parent=55 // pred_fallthru
        _
    $region56: #{patcher_forward.1} parent=5 // pred_fallthru
      _
    %p683 = scmp.le.s32.totalorder 2, %s15
    // Predicated region
    $region61: #{patcher_forward.1} parent=5 // pred_check
      %p684 = pneg %p683
    $region62: #{patcher_forward.1} parent=5 // pred_check_branch
      %686 = sbr.rel (%p684) target = $region64
    $region63: #{patcher_forward.1} parent=5 // pred_region
      %s687 = ssub.s32 %s15, 2
      // Predicated region
      $region65: #{patcher_forward.1} parent=63 // pred_check
        %p688 = pneg %p238
      $region66: #{patcher_forward.1} parent=63 // pred_check_branch
        %690 = sbr.rel (%p688) target = $region68
      $region67: #{patcher_forward.1} parent=63 // pred_region
        %p691 = scmp.lt.s32.totalorder %s21, 1
        %s692 = scalar_select %p691, %s21, 1
        %s693 = smul.addr %s692, 2
        %s694 = smul.addr %s693, 8
        %s695 = scalar_lea.vmem %s9, %s694
      $region68: #{patcher_forward.1} parent=63 // pred_fallthru
        _
    $region64: #{patcher_forward.1} parent=5 // pred_fallthru
      _
  $region6: #{patcher_forward.1} parent=0 // loop_footer
    %s19 = sadd.s32 1, %s15
  $region7: #{patcher_forward.1} parent=0 // loop_footer_branch
    %14 = sbr.rel target = $region3
  $region8: #{patcher_forward.1} parent=0 // loop_exit
    _

</llo_original>
